<compile_context>
chip_gen: v5e
topology: v5e:2x2
jax: 0.10.0
libtpu: 0.0.40
codegen_flags: <defaults>
</compile_context>

<pallas_src>
import jax
import jax.numpy as jnp
from jax.experimental import pallas as pl
from jax.experimental.pallas import tpu as pltpu

KH, KW = 3, 3  # Conv2d(1, 1, 3)


def _round_up(v, m):
    return (v + m - 1) // m * m


def conv3x3_kernel(w_ref, b_ref, x_ref, o_ref):
    # w_ref: SMEM (9,) f32 flattened 3x3 kernel
    # b_ref: SMEM (1,) f32 bias
    # x_ref: VMEM (block_rows, w_lane) f32 -- whole images stacked along rows,
    #        possibly several images packed side-by-side along the 128 lanes
    # o_ref: VMEM (block_rows, w_lane) f32 -- lane-dense output slab
    x = x_ref[...]
    rows, lanes = x.shape

    # Hoist the 9 scalar weight reads out of the MAC chain.
    ws = [w_ref[k] for k in range(KH * KW)]

    # Two lane (column) shifts on the XLU.
    c1 = pltpu.roll(x, shift=lanes - 1, axis=1)
    c2 = pltpu.roll(x, shift=lanes - 2, axis=1)

    # Per-kernel-row partial sums: pure VPU work.
    p0 = ws[0] * x + ws[1] * c1 + ws[2] * c2
    p1 = ws[3] * x + ws[4] * c1 + ws[5] * c2
    p2 = ws[6] * x + ws[7] * c1 + ws[8] * c2

    # Two sublane (row) shifts align the partials: 4 rolls total (was 8).
    acc = p0
    acc = acc + pltpu.roll(p1, shift=rows - 1, axis=0)
    acc = acc + pltpu.roll(p2, shift=rows - 2, axis=0)

    # Bias added once at the single full-width unmasked store.
    o_ref[...] = acc + b_ref[0]


def conv2d_net(x, weight, bias):
    """x: (N, 1, H, W); weight: (1, 1, 3, 3); bias: (1,). Returns (N, 1, H-2, W-2)."""
    n, c, h, w = x.shape
    assert c == 1 and h >= KH and w >= KW
    h_out, w_out = h - KH + 1, w - KW + 1

    x2 = x[:, 0, :, :].astype(jnp.float32)          # (n, h, w)

    # Sublane padding only if H is not already a multiple of 8.
    h_pad = _round_up(h, 8)
    if h_pad != h:
        x2 = jnp.pad(x2, ((0, 0), (0, h_pad - h), (0, 0)))

    # Lane layout: keep rows lane-dense; pack images along lanes when possible.
    if w % 128 == 0:
        segs, w_lane, n_pad = 1, w, n
        slab = x2.reshape(n * h_pad, w_lane)
    elif 128 % w == 0:
        segs = 128 // w
        w_lane = 128
        n_pad = _round_up(n, segs)
        if n_pad != n:
            x2 = jnp.pad(x2, ((0, n_pad - n), (0, 0), (0, 0)))
        groups = n_pad // segs
        slab = (x2.reshape(groups, segs, h_pad, w)
                  .transpose(0, 2, 1, 3)
                  .reshape(groups * h_pad, w_lane))
    else:
        segs = 1
        w_lane = _round_up(w, 128)
        n_pad = n
        x2 = jnp.pad(x2, ((0, 0), (0, 0), (0, w_lane - w)))
        slab = x2.reshape(n * h_pad, w_lane)

    total_rows = slab.shape[0]

    # Strip-mined grid: blocks are whole images/groups (h_pad rows each).
    # ~512 KiB per input block -> ~6 MiB total live VMEM (x, c1, c2, partials,
    # acc, + 2x double-buffered in/out), safe on v5e/v6e/v7x scoped VMEM.
    target_block_bytes = 512 * 1024
    rows_target = max(h_pad, target_block_bytes // (w_lane * 4))
    units_total = total_rows // h_pad
    units_per_block = max(1, min(units_total, rows_target // h_pad))
    block_rows = units_per_block * h_pad
    num_blocks = pl.cdiv(total_rows, block_rows)

    w_flat = weight.reshape(-1).astype(jnp.float32)   # (9,)
    b_flat = bias.reshape(-1).astype(jnp.float32)     # (1,)

    out_slab = pl.pallas_call(
        conv3x3_kernel,
        out_shape=jax.ShapeDtypeStruct((total_rows, w_lane), jnp.float32),
        grid=(num_blocks,),
        in_specs=[
            pl.BlockSpec(memory_space=pltpu.SMEM),                 # weights
            pl.BlockSpec(memory_space=pltpu.SMEM),                 # bias
            pl.BlockSpec((block_rows, w_lane), lambda i: (i, 0)),  # image rows
        ],
        out_specs=pl.BlockSpec((block_rows, w_lane), lambda i: (i, 0)),
        compiler_params=pltpu.CompilerParams(
            dimension_semantics=("parallel",),
            vmem_limit_bytes=32 * 1024 * 1024),
    )(w_flat, b_flat, slab)

    # Unpack: drop the (contaminated) last two rows/cols of each image.
    if segs == 1:
        out = out_slab.reshape(n_pad, h_pad, w_lane)[:n, :h_out, :w_out]
    else:
        groups = n_pad // segs
        out = (out_slab.reshape(groups, h_pad, segs, w)
                       .transpose(0, 2, 1, 3)
                       .reshape(n_pad, h_pad, w)[:n, :h_out, :w_out])
    return out[:, None, :, :]


def reference_conv(x, weight, bias):
    # NCHW conv with OIHW weights, valid padding, stride 1.
    y = jax.lax.conv_general_dilated(
        x, weight, window_strides=(1, 1), padding="VALID",
        dimension_numbers=("NCHW", "OIHW", "NCHW"))
    return y + bias.reshape(1, -1, 1, 1)


if __name__ == "__main__":
    key = jax.random.PRNGKey(0)
    kx, kw, kb = jax.random.split(key, 3)

    # Small shapes consistent with Conv2d(1, 1, 3): batch=2, 1 channel, 16x16.
    x = jax.random.normal(kx, (2, 1, 16, 16), dtype=jnp.float32)

    # Deterministic parameter init (PyTorch-style uniform bound = 1/sqrt(fan_in)).
    fan_in = 1 * KH * KW
    bound = 1.0 / (fan_in ** 0.5)
    weight = jax.random.uniform(kw, (1, 1, KH, KW), jnp.float32, -bound, bound)
    bias = jax.random.uniform(kb, (1,), jnp.float32, -bound, bound)

    out = conv2d_net(x, weight, bias)
    out = jax.block_until_ready(out)

    ref = reference_conv(x, weight, bias)
    assert out.shape == (2, 1, 14, 14), out.shape
    assert jnp.allclose(out, ref, atol=1e-5, rtol=1e-5), \
        float(jnp.max(jnp.abs(out - ref)))

    print("KERNEL_OK")
</pallas_src>

<mosaic_0001>
module attributes {stable_mosaic.version = 11 : i64} {
  func.func @conv3x3_kernel(%arg0: i32, %arg1: memref<9xf32, #tpu.memory_space<smem>>, %arg2: memref<1xf32, #tpu.memory_space<smem>>, %arg3: memref<16x128xf32, #tpu.memory_space<vmem>>, %arg4: memref<16x128xf32, #tpu.memory_space<vmem>>) attributes {dimension_semantics = [#tpu.dimension_semantics<parallel>], iteration_bounds = array<i64: 1>, scalar_prefetch = 0 : i64, scratch_operands = 0 : i64, tpu.core_type = #tpu.core_type<tc>, window_params = [{transform_indices = @transform_0, window_bounds = array<i64: 9>}, {transform_indices = @transform_1, window_bounds = array<i64: 1>}, {transform_indices = @transform_2, window_bounds = array<i64: 16, 128>}, {transform_indices = @transform_3, window_bounds = array<i64: 16, 128>}]} {
    %c0 = arith.constant 0 : index
    %c0_0 = arith.constant 0 : index
    %0 = vector.load %arg3[%c0, %c0_0] : memref<16x128xf32, #tpu.memory_space<vmem>>, vector<16x128xf32>
    %c0_1 = arith.constant 0 : index
    %1 = memref.load %arg1[%c0_1] : memref<9xf32, #tpu.memory_space<smem>>
    %c1 = arith.constant 1 : index
    %2 = memref.load %arg1[%c1] : memref<9xf32, #tpu.memory_space<smem>>
    %c2 = arith.constant 2 : index
    %3 = memref.load %arg1[%c2] : memref<9xf32, #tpu.memory_space<smem>>
    %c3 = arith.constant 3 : index
    %4 = memref.load %arg1[%c3] : memref<9xf32, #tpu.memory_space<smem>>
    %c4 = arith.constant 4 : index
    %5 = memref.load %arg1[%c4] : memref<9xf32, #tpu.memory_space<smem>>
    %c5 = arith.constant 5 : index
    %6 = memref.load %arg1[%c5] : memref<9xf32, #tpu.memory_space<smem>>
    %c6 = arith.constant 6 : index
    %7 = memref.load %arg1[%c6] : memref<9xf32, #tpu.memory_space<smem>>
    %c7 = arith.constant 7 : index
    %8 = memref.load %arg1[%c7] : memref<9xf32, #tpu.memory_space<smem>>
    %c8 = arith.constant 8 : index
    %9 = memref.load %arg1[%c8] : memref<9xf32, #tpu.memory_space<smem>>
    %c127_i32 = arith.constant 127 : i32
    %10 = tpu.dynamic_rotate %0 by %c127_i32 dim 1 : vector<16x128xf32>, i32 -> vector<16x128xf32>
    %c126_i32 = arith.constant 126 : i32
    %11 = tpu.dynamic_rotate %0 by %c126_i32 dim 1 : vector<16x128xf32>, i32 -> vector<16x128xf32>
    %12 = vector.broadcast %1 : f32 to vector<16x128xf32>
    %13 = arith.mulf %12, %0 : vector<16x128xf32>
    %14 = vector.broadcast %2 : f32 to vector<16x128xf32>
    %15 = arith.mulf %14, %10 : vector<16x128xf32>
    %16 = arith.addf %13, %15 : vector<16x128xf32>
    %17 = vector.broadcast %3 : f32 to vector<16x128xf32>
    %18 = arith.mulf %17, %11 : vector<16x128xf32>
    %19 = arith.addf %16, %18 : vector<16x128xf32>
    %20 = vector.broadcast %4 : f32 to vector<16x128xf32>
    %21 = arith.mulf %20, %0 : vector<16x128xf32>
    %22 = vector.broadcast %5 : f32 to vector<16x128xf32>
    %23 = arith.mulf %22, %10 : vector<16x128xf32>
    %24 = arith.addf %21, %23 : vector<16x128xf32>
    %25 = vector.broadcast %6 : f32 to vector<16x128xf32>
    %26 = arith.mulf %25, %11 : vector<16x128xf32>
    %27 = arith.addf %24, %26 : vector<16x128xf32>
    %28 = vector.broadcast %7 : f32 to vector<16x128xf32>
    %29 = arith.mulf %28, %0 : vector<16x128xf32>
    %30 = vector.broadcast %8 : f32 to vector<16x128xf32>
    %31 = arith.mulf %30, %10 : vector<16x128xf32>
    %32 = arith.addf %29, %31 : vector<16x128xf32>
    %33 = vector.broadcast %9 : f32 to vector<16x128xf32>
    %34 = arith.mulf %33, %11 : vector<16x128xf32>
    %35 = arith.addf %32, %34 : vector<16x128xf32>
    %c15_i32 = arith.constant 15 : i32
    %36 = tpu.dynamic_rotate %27 by %c15_i32 dim 0 : vector<16x128xf32>, i32 -> vector<16x128xf32>
    %37 = arith.addf %19, %36 : vector<16x128xf32>
    %c14_i32 = arith.constant 14 : i32
    %38 = tpu.dynamic_rotate %35 by %c14_i32 dim 0 : vector<16x128xf32>, i32 -> vector<16x128xf32>
    %39 = arith.addf %37, %38 : vector<16x128xf32>
    %c0_2 = arith.constant 0 : index
    %40 = memref.load %arg2[%c0_2] : memref<1xf32, #tpu.memory_space<smem>>
    %41 = vector.broadcast %40 : f32 to vector<16x128xf32>
    %42 = arith.addf %39, %41 : vector<16x128xf32>
    %c0_3 = arith.constant 0 : index
    %c0_4 = arith.constant 0 : index
    %43 = vector.load %arg4[%c0_3, %c0_4] : memref<16x128xf32, #tpu.memory_space<vmem>>, vector<16x128xf32>
    tpu.vector_store %arg4[%c0_3, %c0_4], %42 {strides = array<i32>} : memref<16x128xf32, #tpu.memory_space<vmem>>, vector<16x128xf32>,
    return
  }
  func.func @transform_0(%arg0: i32) -> i32 {
    %c0_i32 = arith.constant 0 : i32
    %c0_i32_0 = arith.constant 0 : i32
    return %c0_i32 : i32
  }
  func.func @transform_1(%arg0: i32) -> i32 {
    %c0_i32 = arith.constant 0 : i32
    %c0_i32_0 = arith.constant 0 : i32
    return %c0_i32 : i32
  }
  func.func @transform_2(%arg0: i32) -> (i32, i32) {
    %c0_i32 = arith.constant 0 : i32
    %c0_i32_0 = arith.constant 0 : i32
    return %arg0, %c0_i32 : i32, i32
  }
  func.func @transform_3(%arg0: i32) -> (i32, i32) {
    %c0_i32 = arith.constant 0 : i32
    %c0_i32_0 = arith.constant 0 : i32
    return %arg0, %c0_i32 : i32, i32
  }
}

</mosaic_0001>

<llo_original>
// kernel: tpu_custom_call.1
$region0: #{tpu_custom_call.1}
  #allocation0 [shape = 'u32[]', space=smem, size = 0x4, offset = 0x4, fixed_abs, tag = 'smem constant byte address 0x4 - core index']
  #allocation1 [shape = 'u32[72,128]{1,0:T(1,128)}', space=vmem, size = 0x9000, scoped, tag = 'internal scratch']
  #allocation2 [shape = 'f32[1]{0:T(128)S(6)}', space=smem, size = 0x200, scoped, tag = 'scoped memory for tpu_custom_call.1']
  %s0 = inlined_call_operand.vmem [shape: f32[9], index: 0, kind: input, shape index: {}]
  %s1 = inlined_call_operand.<no memory space> [shape: f32[1], index: 1, kind: input, shape index: {}]
  %s2 = inlined_call_operand.hbm [shape: f32[16,128], index: 2, kind: input, shape index: {}]
  %s3 = inlined_call_operand.hbm [shape: f32[16,128], index: 3, kind: output, shape index: {}]
  %s4 = sld [smem:[#allocation0]]
  $region30: #{tpu_custom_call.1} parent=0
    _
  %s6 = ssub.s32 1, %s4
  %s7 = scalar_select 0, %s6, %s4
  %8 = sst [smem:[#allocation2]] %s1
  $region1: #{tpu_custom_call.1} parent=0
    #allocation3 [shape = 'u8[512]{0}', space=smem, size = 0x200, scoped, tag = 'input window, operand 0, single buffered']
    #allocation4 [shape = 's32[1]{0}', space=sflag, size = 0x4, scoped, tag = 'scoped memory for tpu_custom_call.1']
    #allocation5 [shape = 's32[1]{0}', space=sflag, size = 0x4, scoped, tag = 'scoped memory for tpu_custom_call.1']
    #allocation6 [shape = 's32[1]{0}', space=sflag, size = 0x4, scoped, tag = 'scoped memory for tpu_custom_call.1']
    #allocation7 [shape = 'u8[8192]{0}', space=vmem, size = 0x2000, scoped, tag = 'input window, operand 2, single buffered']
    #allocation8 [shape = 'u8[8192]{0}', space=vmem, size = 0x2000, scoped, tag = 'output window, operand 0, single buffered']
    %9 = vsyncpa [#allocation6], 0
    %10 = vsyncpa [#allocation4], 0
    %11 = vsyncpa [#allocation5], 0
    // Predicated region
    $region2: #{tpu_custom_call.1} parent=1 // pred_check
      _
    $region3: #{tpu_custom_call.1} parent=1 // pred_check_branch
      %13 = sbr.rel (0) target = $region5
    $region4: #{tpu_custom_call.1} parent=1 // pred_region
      %15 = vsyncadd [#allocation6], 0
      %s17 = sshll.u32 %s0, 4
      %s18 = int_to_ptr.vmem [resolvable:$true] %s17
      %20 = dma.vmem_to_smem %s18, 16, [#allocation3], [#allocation6]
    $region5: #{tpu_custom_call.1} parent=1 // pred_fallthru
      _
    // Predicated region
    $region6: #{tpu_custom_call.1} parent=1 // pred_check
      _
    $region7: #{tpu_custom_call.1} parent=1 // pred_check_branch
      %22 = sbr.rel (0) target = $region9
    $region8: #{tpu_custom_call.1} parent=1 // pred_region
      _
    $region9: #{tpu_custom_call.1} parent=1 // pred_fallthru
      _
    // Predicated region
    $region10: #{tpu_custom_call.1} parent=1 // pred_check
      _
    $region11: #{tpu_custom_call.1} parent=1 // pred_check_branch
      %24 = sbr.rel (0) target = $region13
    $region12: #{tpu_custom_call.1} parent=1 // pred_region
      %26 = vsyncadd [#allocation4], 0
      %s27 = sshll.u32 %s2, 4
      %s28 = int_to_ptr.hbm [resolvable:$true] %s27
      %s29 = sshll.u32 [#allocation7], 4
      %s30 = int_to_ptr.vmem [resolvable:$true] %s29
      %35 = dma.hbm_to_vmem [thread:$0]  %s28, 256, %s30, [#allocation4], 128, 128, 8
    $region13: #{tpu_custom_call.1} parent=1 // pred_fallthru
      _
    // Predicated region
    $region14: #{tpu_custom_call.1} parent=1 // pred_check
      _
    $region15: #{tpu_custom_call.1} parent=1 // pred_check_branch
      %37 = sbr.rel (0) target = $region17
    $region16: #{tpu_custom_call.1} parent=1 // pred_region
      %39 = dma.done [#allocation6], 16
    $region17: #{tpu_custom_call.1} parent=1 // pred_fallthru
      _
    // Predicated region
    $region18: #{tpu_custom_call.1} parent=1 // pred_check
      _
    $region19: #{tpu_custom_call.1} parent=1 // pred_check_branch
      %41 = sbr.rel (0) target = $region21
    $region20: #{tpu_custom_call.1} parent=1 // pred_region
      %43 = dma.done [#allocation4], 256
    $region21: #{tpu_custom_call.1} parent=1 // pred_fallthru
      _
    %44 = sfence
    %v45 = vld [vmem:[#allocation7] sm:$0xff]
    %v46 = vld [vmem:[#allocation7 + $0x8] sm:$0xff]
    %s47 = sld [smem:[#allocation3]]
    %s48 = sld [smem:[#allocation3 + $0x1]]
    %s49 = sld [smem:[#allocation3 + $0x2]]
    %s50 = sld [smem:[#allocation3 + $0x3]]
    %s51 = sld [smem:[#allocation3 + $0x4]]
    %s52 = sld [smem:[#allocation3 + $0x5]]
    %s53 = sld [smem:[#allocation3 + $0x6]]
    %s54 = sld [smem:[#allocation3 + $0x7]]
    %s55 = sld [smem:[#allocation3 + $0x8]]
    %56 = vrot.lane.b32.xlu0 %v45, 127
    %v57 = vpop.permute.xlu0 %56
    %58 = vrot.lane.b32.xlu0 %v46, 127
    %v59 = vpop.permute.xlu0 %58
    %60 = vrot.lane.b32.xlu0 %v45, 126
    %v61 = vpop.permute.xlu0 %60
    %62 = vrot.lane.b32.xlu0 %v46, 126
    %v63 = vpop.permute.xlu0 %62
    %v64 = vstv %s47
    %v65 = vmul.f32 %v64, %v45
    %v66 = vmul.f32 %v64, %v46
    %v67 = vstv %s48
    %v68 = vmul.f32 %v67, %v57
    %v69 = vmul.f32 %v67, %v59
    %v70 = vadd.f32 %v65, %v68
    %v71 = vadd.f32 %v66, %v69
    %v72 = vstv %s49
    %v73 = vmul.f32 %v72, %v61
    %v74 = vmul.f32 %v72, %v63
    %v75 = vadd.f32 %v70, %v73
    %v76 = vadd.f32 %v71, %v74
    %v77 = vstv %s50
    %v78 = vmul.f32 %v77, %v45
    %v79 = vmul.f32 %v77, %v46
    %v80 = vstv %s51
    %v81 = vmul.f32 %v80, %v57
    %v82 = vmul.f32 %v80, %v59
    %v83 = vadd.f32 %v78, %v81
    %v84 = vadd.f32 %v79, %v82
    %v85 = vstv %s52
    %v86 = vmul.f32 %v85, %v61
    %v87 = vmul.f32 %v85, %v63
    %v88 = vadd.f32 %v83, %v86
    %v89 = vadd.f32 %v84, %v87
    %v90 = vstv %s53
    %v91 = vmul.f32 %v90, %v45
    %v92 = vmul.f32 %v90, %v46
    %v93 = vstv %s54
    %v94 = vmul.f32 %v93, %v57
    %v95 = vmul.f32 %v93, %v59
    %v96 = vadd.f32 %v91, %v94
    %v97 = vadd.f32 %v92, %v95
    %v98 = vstv %s55
    %v99 = vmul.f32 %v98, %v61
    %v100 = vmul.f32 %v98, %v63
    %v101 = vadd.f32 %v96, %v99
    %v102 = vadd.f32 %v97, %v100
    %v103 = vrot.slane %v88, 1
    %v104 = vrot.slane %v89, 1
    %v105 = vlaneseq
    %v106 = vshrl.u32 %v105, 7
    %vm107 = vcmp.lt.s32.totalorder %v106, 7
    %v108 = vsel %vm107, %v103, %v104
    %v109 = vsel %vm107, %v104, %v103
    %v110 = vadd.f32 %v75, %v108
    %v111 = vadd.f32 %v76, %v109
    %v112 = vrot.slane %v101, 2
    %v113 = vrot.slane %v102, 2
    %vm114 = vcmp.lt.s32.totalorder %v106, 6
    %v115 = vsel %vm114, %v112, %v113
    %v116 = vsel %vm114, %v113, %v112
    %v117 = vadd.f32 %v110, %v115
    %v118 = vadd.f32 %v111, %v116
    %s119 = sld [smem:[#allocation2]]
    %v120 = vstv %s119
    %v121 = vadd.f32 %v117, %v120
    %v122 = vadd.f32 %v118, %v120
    %123 = vst [vmem:[#allocation8] sm:$0xff] %v121
    %124 = vst [vmem:[#allocation8 + $0x8] sm:$0xff] %v122
    // Predicated region
    $region22: #{tpu_custom_call.1} parent=1 // pred_check
      _
    $region23: #{tpu_custom_call.1} parent=1 // pred_check_branch
      %126 = sbr.rel (0) target = $region25
    $region24: #{tpu_custom_call.1} parent=1 // pred_region
      %128 = vsyncadd [#allocation5], 0
      %s129 = sshll.u32 [#allocation8], 4
      %s130 = int_to_ptr.vmem [resolvable:$true] %s129
      %s131 = sshll.u32 %s3, 4
      %s132 = int_to_ptr.hbm [resolvable:$true] %s131
      %137 = dma.vmem_to_hbm [thread:$0]  %s130, 256, %s132, [#allocation5], 128, 128, 8
    $region25: #{tpu_custom_call.1} parent=1 // pred_fallthru
      _
    // Predicated region
    $region26: #{tpu_custom_call.1} parent=1 // pred_check
      _
    $region27: #{tpu_custom_call.1} parent=1 // pred_check_branch
      %139 = sbr.rel (0) target = $region29
    $region28: #{tpu_custom_call.1} parent=1 // pred_region
      %141 = dma.done [#allocation5], 256
    $region29: #{tpu_custom_call.1} parent=1 // pred_fallthru
      _
    %142 = vsyncpa [#allocation4], 1
    %143 = vsyncpa [#allocation5], 1
    %144 = vsyncpa [#allocation6], 1

</llo_original>
